<compile_context>
chip_gen: v7x
topology: tpu7x:2x2x1
jax: 0.10.0
libtpu: 0.0.40
codegen_flags: <defaults>
</compile_context>

<pallas_src>
import functools

import jax
import jax.numpy as jnp
from jax.experimental import pallas as pl
from jax.experimental.pallas import tpu as pltpu


# ----------------------------- shared math -----------------------------------

def _act(x):
    # swish / SiLU.  exp + divide already land on the EUP/VPU with slack while
    # the MXU is the binding slot, so no pl.reciprocal rewrite is needed here.
    return x * jax.nn.sigmoid(x)


# ----------------------------- Pallas kernel ----------------------------------

def fc2_kernel(x_ref, *refs, num_hidden):
    """One batch tile of the FC2 MLP.

    refs layout (all inputs, then the single output):
      w1t, b1, [wh_t, bh] * num_hidden, wend_t, bend, out_ref
    Weight refs may be bf16 (pre-cast in the wrapper); biases / output are f32.
    """
    out_ref = refs[-1]
    w_refs = refs[:-1]

    # fc_1 + act : x is already the concatenation of all flattened inputs.
    w1t_ref, b1_ref = w_refs[0], w_refs[1]
    h = jnp.dot(x_ref[...], w1t_ref[...],
                preferred_element_type=jnp.float32) + b1_ref[...]
    h = _act(h)

    # hidden fc_i + act (static Python unroll over the configured layer count).
    for l in range(num_hidden):
        wt_ref = w_refs[2 + 2 * l]
        b_ref = w_refs[3 + 2 * l]
        h = jnp.dot(h.astype(wt_ref.dtype), wt_ref[...],
                    preferred_element_type=jnp.float32) + b_ref[...]
        h = _act(h)

    # fc_end : NO trailing activation (matches nn.Sequential ending in Linear).
    wend_ref, bend_ref = w_refs[-2], w_refs[-1]
    out = jnp.dot(h.astype(wend_ref.dtype), wend_ref[...],
                  preferred_element_type=jnp.float32) + bend_ref[...]
    out_ref[...] = out.astype(out_ref.dtype)


# ------------------------------ JAX wrapper ------------------------------------

def _round_up(v, m):
    return ((v + m - 1) // m) * m


def _resident_spec(shape):
    """Full-array block that stays VMEM-resident across all batch-grid steps."""
    nd = len(shape)
    return pl.BlockSpec(shape, lambda i, nd=nd: (0,) * nd)


def _flatten_concat(inputs):
    B = inputs[0].shape[0]
    if len(inputs) == 1 and inputs[0].ndim == 2:
        return inputs[0]                      # nothing to flatten/concat
    return jnp.concatenate([inp.reshape(B, -1) for inp in inputs], axis=1)


def fc2_reference(inputs, params, *, use_bf16=True):
    """Pure-jnp FC2 forward (XLA fallback + correctness reference)."""
    compute_dt = jnp.bfloat16 if use_bf16 else jnp.float32
    x = _flatten_concat(inputs).astype(compute_dt)

    def lin(h, w, b):
        return jnp.dot(h.astype(compute_dt), w.T.astype(compute_dt),
                       preferred_element_type=jnp.float32) + b.astype(jnp.float32)

    h = _act(lin(x, params["w1"], params["b1"]))
    for w, b in zip(params["wh"], params["bh"]):
        h = _act(lin(h, w, b))
    return lin(h, params["w_end"], params["b_end"])


def fc2_forward(inputs, params, *, tb=None, use_bf16=True, min_pallas_batch=0):
    """Mirrors FC2.forward.

    inputs : list of arrays, each (B, ...); flattened and concatenated on axis 1.
    params : dict with
        "w1"  (internal, in_size),  "b1"  (internal,)
        "wh"  list of (internal, internal), "bh" list of (internal,)
        "w_end" (out_size, internal), "b_end" (out_size,)
    use_bf16          : cast x / weights to bf16 (f32 accumulation).  Set False
                        for strict f32 parity with the PyTorch reference.
    min_pallas_batch  : below this batch size, run the fused-XLA path instead of
                        the Pallas kernel (launch overhead dominates there);
                        ~256 is a sensible production value, 0 disables.
    Returns pre_quad_out of shape (B, out_size), float32.
    """
    B = inputs[0].shape[0]
    if B < min_pallas_batch:
        return fc2_reference(inputs, params, use_bf16=use_bf16)

    compute_dt = jnp.bfloat16 if use_bf16 else jnp.float32

    # --- layout plumbing (wrapper-side, free): flatten + concat (+ cast) ------
    x = _flatten_concat(inputs).astype(compute_dt)
    in_size = x.shape[1]

    internal = params["w1"].shape[0]
    out_size = params["w_end"].shape[0]
    num_hidden = len(params["wh"])

    # pre-transpose weights; biases stay f32 as (1, N) rows.
    w1t = params["w1"].T.astype(compute_dt)                       # (in_size, internal)
    b1 = params["b1"].reshape(1, internal).astype(jnp.float32)
    wh_t = [w.T.astype(compute_dt) for w in params["wh"]]         # (internal, internal)
    bh = [b.reshape(1, internal).astype(jnp.float32) for b in params["bh"]]
    wend_t = params["w_end"].T.astype(compute_dt)                 # (internal, out_size)
    bend = params["b_end"].reshape(1, out_size).astype(jnp.float32)

    # --- batch tiling (no padding, no output slice) ---------------------------
    if tb is None:
        # Big tiles (fewer ~0.35us grid-step overheads), but at least 2 grid
        # steps when possible so v7x can shard the batch over both TCs.
        # Per-row VMEM footprint is ~0.5 KiB, so tb=2048 (double-buffered) is
        # only a few MiB -- far below even v7x's 64 MiB VMEM.
        tb = min(2048, _round_up(pl.cdiv(B, 2), 8))
    if tb >= B:
        tb = B        # single full-extent block (always a legal block shape)
    grid = (pl.cdiv(B, tb),)    # ragged last block is handled by Pallas

    weight_args = [w1t, b1]
    for wt, b in zip(wh_t, bh):
        weight_args += [wt, b]
    weight_args += [wend_t, bend]

    in_specs = [pl.BlockSpec((tb, in_size), lambda i: (i, 0))]
    in_specs += [_resident_spec(a.shape) for a in weight_args]
    out_specs = pl.BlockSpec((tb, out_size), lambda i: (i, 0))
    out_shape = jax.ShapeDtypeStruct((B, out_size), jnp.float32)

    return pl.pallas_call(
        functools.partial(fc2_kernel, num_hidden=num_hidden),
        grid=grid,
        in_specs=in_specs,
        out_specs=out_specs,
        out_shape=out_shape,
        compiler_params=pltpu.CompilerParams(
            dimension_semantics=("parallel",)),
    )(x, *weight_args)


# --------------------------------- main -----------------------------------------

if __name__ == "__main__":
    key = jax.random.PRNGKey(0)
    ks = jax.random.split(key, 10)

    # Example config: two input states (cct_status == 3), one hidden layer.
    # B chosen so the auto-derived tile (tb=64) gives 2 grid steps with a
    # ragged last block (56 rows) -> exercises the no-pad / clipped-write path
    # and the dual-TC "parallel" sharding on v7x.
    B = 120
    internal = 64                      # self.internal_size
    out_size = 32                      # prod(state_sizes[state_layer_idx][1:])
    in0_shape = (B, 4, 8)              # flattens to 32 features
    in1_shape = (B, 16)                # flattens to 16 features
    num_hidden = 1                     # mod_num_lyr_dict[state_layer_idx]

    inputs = [
        jax.random.normal(ks[0], in0_shape, jnp.float32),
        jax.random.normal(ks[1], in1_shape, jnp.float32),
    ]
    in_size = 4 * 8 + 16               # 48

    params = dict(
        w1=jax.random.normal(ks[2], (internal, in_size), jnp.float32) * 0.1,
        b1=jax.random.normal(ks[3], (internal,), jnp.float32) * 0.01,
        wh=[jax.random.normal(ks[4], (internal, internal), jnp.float32) * 0.1],
        bh=[jax.random.normal(ks[5], (internal,), jnp.float32) * 0.01],
        w_end=jax.random.normal(ks[6], (out_size, internal), jnp.float32) * 0.1,
        b_end=jax.random.normal(ks[7], (out_size,), jnp.float32) * 0.01,
    )

    pre_quad_out = fc2_forward(inputs, params)
    jax.block_until_ready(pre_quad_out)

    assert pre_quad_out.shape == (B, out_size)
    assert pre_quad_out.dtype == jnp.float32

    # Verify the ragged (non-multiple-of-tb) batch path against the pure-JAX
    # reference with matching operand dtypes.
    ref = fc2_reference(inputs, params, use_bf16=True)
    jax.block_until_ready(ref)
    assert jnp.allclose(pre_quad_out, ref, rtol=2e-2, atol=2e-2), (
        float(jnp.max(jnp.abs(pre_quad_out - ref))))

    print("KERNEL_OK")
</pallas_src>

<mosaic_0001>
module attributes {stable_mosaic.version = 11 : i64} {
  func.func @fc2_kernel(%arg0: i32, %arg1: memref<64x48xbf16, #tpu.memory_space<vmem>>, %arg2: memref<48x64xbf16, #tpu.memory_space<vmem>>, %arg3: memref<1x64xf32, #tpu.memory_space<vmem>>, %arg4: memref<64x64xbf16, #tpu.memory_space<vmem>>, %arg5: memref<1x64xf32, #tpu.memory_space<vmem>>, %arg6: memref<64x32xbf16, #tpu.memory_space<vmem>>, %arg7: memref<1x32xf32, #tpu.memory_space<vmem>>, %arg8: memref<64x32xf32, #tpu.memory_space<vmem>>) attributes {dimension_semantics = [#tpu.dimension_semantics<parallel>], iteration_bounds = array<i64: 2>, scalar_prefetch = 0 : i64, scratch_operands = 0 : i64, tpu.core_type = #tpu.core_type<tc>, window_params = [{transform_indices = @transform_0, window_bounds = array<i64: 64, 48>}, {pipeline_mode = #tpu.pipeline_mode<synchronous>, transform_indices = @transform_1, window_bounds = array<i64: 48, 64>}, {pipeline_mode = #tpu.pipeline_mode<synchronous>, transform_indices = @transform_2, window_bounds = array<i64: 1, 64>}, {pipeline_mode = #tpu.pipeline_mode<synchronous>, transform_indices = @transform_3, window_bounds = array<i64: 64, 64>}, {pipeline_mode = #tpu.pipeline_mode<synchronous>, transform_indices = @transform_4, window_bounds = array<i64: 1, 64>}, {pipeline_mode = #tpu.pipeline_mode<synchronous>, transform_indices = @transform_5, window_bounds = array<i64: 64, 32>}, {pipeline_mode = #tpu.pipeline_mode<synchronous>, transform_indices = @transform_6, window_bounds = array<i64: 1, 32>}, {transform_indices = @transform_7, window_bounds = array<i64: 64, 32>}]} {
    %c0 = arith.constant 0 : index
    %c0_0 = arith.constant 0 : index
    %0 = vector.load %arg1[%c0, %c0_0] : memref<64x48xbf16, #tpu.memory_space<vmem>>, vector<64x48xbf16>
    %c0_1 = arith.constant 0 : index
    %c0_2 = arith.constant 0 : index
    %1 = vector.load %arg2[%c0_1, %c0_2] : memref<48x64xbf16, #tpu.memory_space<vmem>>, vector<48x64xbf16>
    %cst = arith.constant dense<0.000000e+00> : vector<64x64xf32>
    %2 = tpu.matmul %0, %1, %cst {dimension_numbers = #tpu.dot_dimension_numbers<[1], [0], [0], [1], [0, 0, 1, 1], [], []>} : vector<64x48xbf16>, vector<48x64xbf16>, vector<64x64xf32> -> vector<64x64xf32>
    %c0_3 = arith.constant 0 : index
    %c0_4 = arith.constant 0 : index
    %3 = vector.load %arg3[%c0_3, %c0_4] : memref<1x64xf32, #tpu.memory_space<vmem>>, vector<1x64xf32>
    %4 = vector.broadcast %3 : vector<1x64xf32> to vector<64x64xf32>
    %5 = arith.addf %2, %4 : vector<64x64xf32>
    %6 = arith.negf %5 : vector<64x64xf32>
    %7 = math.exp %6 : vector<64x64xf32>
    %cst_5 = arith.constant 1.000000e+00 : f32
    %8 = vector.broadcast %cst_5 : f32 to vector<64x64xf32>
    %9 = arith.addf %8, %7 : vector<64x64xf32>
    %10 = arith.divf %8, %9 : vector<64x64xf32>
    %11 = arith.mulf %5, %10 : vector<64x64xf32>
    %12 = arith.truncf %11 : vector<64x64xf32> to vector<64x64xbf16>
    %c0_6 = arith.constant 0 : index
    %c0_7 = arith.constant 0 : index
    %13 = vector.load %arg4[%c0_6, %c0_7] : memref<64x64xbf16, #tpu.memory_space<vmem>>, vector<64x64xbf16>
    %cst_8 = arith.constant dense<0.000000e+00> : vector<64x64xf32>
    %14 = tpu.matmul %12, %13, %cst_8 {dimension_numbers = #tpu.dot_dimension_numbers<[1], [0], [0], [1], [0, 0, 1, 1], [], []>} : vector<64x64xbf16>, vector<64x64xbf16>, vector<64x64xf32> -> vector<64x64xf32>
    %c0_9 = arith.constant 0 : index
    %c0_10 = arith.constant 0 : index
    %15 = vector.load %arg5[%c0_9, %c0_10] : memref<1x64xf32, #tpu.memory_space<vmem>>, vector<1x64xf32>
    %16 = vector.broadcast %15 : vector<1x64xf32> to vector<64x64xf32>
    %17 = arith.addf %14, %16 : vector<64x64xf32>
    %18 = arith.negf %17 : vector<64x64xf32>
    %19 = math.exp %18 : vector<64x64xf32>
    %cst_11 = arith.constant 1.000000e+00 : f32
    %20 = vector.broadcast %cst_11 : f32 to vector<64x64xf32>
    %21 = arith.addf %20, %19 : vector<64x64xf32>
    %22 = arith.divf %20, %21 : vector<64x64xf32>
    %23 = arith.mulf %17, %22 : vector<64x64xf32>
    %24 = arith.truncf %23 : vector<64x64xf32> to vector<64x64xbf16>
    %c0_12 = arith.constant 0 : index
    %c0_13 = arith.constant 0 : index
    %25 = vector.load %arg6[%c0_12, %c0_13] : memref<64x32xbf16, #tpu.memory_space<vmem>>, vector<64x32xbf16>
    %cst_14 = arith.constant dense<0.000000e+00> : vector<64x32xf32>
    %26 = tpu.matmul %24, %25, %cst_14 {dimension_numbers = #tpu.dot_dimension_numbers<[1], [0], [0], [1], [0, 0, 1, 1], [], []>} : vector<64x64xbf16>, vector<64x32xbf16>, vector<64x32xf32> -> vector<64x32xf32>
    %c0_15 = arith.constant 0 : index
    %c0_16 = arith.constant 0 : index
    %27 = vector.load %arg7[%c0_15, %c0_16] : memref<1x32xf32, #tpu.memory_space<vmem>>, vector<1x32xf32>
    %28 = vector.broadcast %27 : vector<1x32xf32> to vector<64x32xf32>
    %29 = arith.addf %26, %28 : vector<64x32xf32>
    %c0_17 = arith.constant 0 : index
    %c0_18 = arith.constant 0 : index
    %30 = vector.load %arg8[%c0_17, %c0_18] : memref<64x32xf32, #tpu.memory_space<vmem>>, vector<64x32xf32>
    tpu.vector_store %arg8[%c0_17, %c0_18], %29 {strides = array<i32>} : memref<64x32xf32, #tpu.memory_space<vmem>>, vector<64x32xf32>,
    return
  }
  func.func @transform_0(%arg0: i32) -> (i32, i32) {
    %c0_i32 = arith.constant 0 : i32
    %c0_i32_0 = arith.constant 0 : i32
    return %arg0, %c0_i32 : i32, i32
  }
  func.func @transform_1(%arg0: i32) -> (i32, i32) {
    %c0_i32 = arith.constant 0 : i32
    %c0_i32_0 = arith.constant 0 : i32
    %c0_i32_1 = arith.constant 0 : i32
    return %c0_i32, %c0_i32_0 : i32, i32
  }
  func.func @transform_2(%arg0: i32) -> (i32, i32) {
    %c0_i32 = arith.constant 0 : i32
    %c0_i32_0 = arith.constant 0 : i32
    %c0_i32_1 = arith.constant 0 : i32
    return %c0_i32, %c0_i32_0 : i32, i32
  }
  func.func @transform_3(%arg0: i32) -> (i32, i32) {
    %c0_i32 = arith.constant 0 : i32
    %c0_i32_0 = arith.constant 0 : i32
    %c0_i32_1 = arith.constant 0 : i32
    return %c0_i32, %c0_i32_0 : i32, i32
  }
  func.func @transform_4(%arg0: i32) -> (i32, i32) {
    %c0_i32 = arith.constant 0 : i32
    %c0_i32_0 = arith.constant 0 : i32
    %c0_i32_1 = arith.constant 0 : i32
    return %c0_i32, %c0_i32_0 : i32, i32
  }
  func.func @transform_5(%arg0: i32) -> (i32, i32) {
    %c0_i32 = arith.constant 0 : i32
    %c0_i32_0 = arith.constant 0 : i32
    %c0_i32_1 = arith.constant 0 : i32
    return %c0_i32, %c0_i32_0 : i32, i32
  }
  func.func @transform_6(%arg0: i32) -> (i32, i32) {
    %c0_i32 = arith.constant 0 : i32
    %c0_i32_0 = arith.constant 0 : i32
    %c0_i32_1 = arith.constant 0 : i32
    return %c0_i32, %c0_i32_0 : i32, i32
  }
  func.func @transform_7(%arg0: i32) -> (i32, i32) {
    %c0_i32 = arith.constant 0 : i32
    %c0_i32_0 = arith.constant 0 : i32
    return %arg0, %c0_i32 : i32, i32
  }
}

</mosaic_0001>

<llo_original>
// kernel: tpu_custom_call.1
$region0: #{tpu_custom_call.1}
  #allocation0 [shape = 'u32[]', space=smem, size = 0x4, offset = 0x4, fixed_abs, tag = 'smem constant byte address 0x4 - core index']
  #allocation1 [shape = 'u32[144,128]{1,0:T(1,128)}', space=vmem, size = 0x12000, scoped, tag = 'internal scratch']
  %s0 = inlined_call_operand.vmem [shape: bf16[120,48], index: 0, kind: input, shape index: {}]
  %s1 = inlined_call_operand.vmem [shape: bf16[48,64], index: 1, kind: input, shape index: {}]
  %s2 = inlined_call_operand.vmem [shape: f32[1,64], index: 2, kind: input, shape index: {}]
  %s3 = inlined_call_operand.vmem [shape: bf16[64,64], index: 3, kind: input, shape index: {}]
  %s4 = inlined_call_operand.vmem [shape: f32[1,64], index: 4, kind: input, shape index: {}]
  %s5 = inlined_call_operand.vmem [shape: bf16[64,32], index: 5, kind: input, shape index: {}]
  %s6 = inlined_call_operand.vmem [shape: f32[1,32], index: 6, kind: input, shape index: {}]
  %s7 = inlined_call_operand.vmem [shape: f32[120,32], index: 7, kind: output, shape index: {}]
  %s8 = sld [smem:[#allocation0]]
  $region109: #{tpu_custom_call.1} parent=0
    _
  %s10 = ssub.s32 1, %s8
  %s11 = scalar_select 0, %s10, %s8
  $region1: #{tpu_custom_call.1} parent=0
    #allocation2 [shape = 'u8[65536]{0}', space=vmem, size = 0x10000, scoped, tag = 'output window, operand 0']
    loop: start=0, step=1, limit=4
    $region2: #{tpu_custom_call.1} parent=1 // loop_pre_header
      _
    $region3: #{tpu_custom_call.1} parent=1 // loop_header
      %s13 = sphi 0, %s17
      %p14 = scmp.ge.s32.totalorder %s13, 4
      %s23 = sphi 0, %s25
      %s26 = sphi 0, %s23
      %s27 = sphi 0, %s26
      %s43 = sphi 0, %s27
      %s47 = sphi 0, %s47
      %s49 = sphi 0, %s47
      %s50 = sphi 0, %s49
      %s64 = sphi 0, %s50
      %s68 = sphi 0, %s68
      %s70 = sphi 0, %s68
      %s71 = sphi 0, %s70
      %s85 = sphi 0, %s71
      %s89 = sphi 0, %s89
      %s91 = sphi 0, %s89
      %s92 = sphi 0, %s91
      %s106 = sphi 0, %s92
      %s110 = sphi 0, %s110
      %s112 = sphi 0, %s110
      %s113 = sphi 0, %s112
      %s127 = sphi 0, %s113
      %s131 = sphi 0, %s131
      %s133 = sphi 0, %s131
      %s134 = sphi 0, %s133
      %s148 = sphi 0, %s134
      %s152 = sphi 0, %s152
      %s154 = sphi 0, %s152
      %s155 = sphi 0, %s154
      %s169 = sphi 0, %s155
      %s175 = sphi 0, %s177
      %s178 = sphi 0, %s175
      %s179 = sphi 0, %s178
      %s195 = sphi 0, %s179
    $region4: #{tpu_custom_call.1} parent=1 // loop_header_branch
      %16 = sbr.rel (%p14) target = $region8
    $region5: #{tpu_custom_call.1} parent=1 // loop_body
      %s18 = ssub.s32 %s13, 1
      %s19 = ssub.s32 %s13, 2
      %s20 = sadd.s32 %s13, 1
      %s21 = ssub.s32 %s13, %s20
      %p22 = scmp.eq.s32.totalorder %s21, 0
      %s24 = sadd.s32 %s23, 1
      %s25 = scalar_select %p22, %s23, %s24
      %p28 = pneg %p22
      %p29 = scmp.eq.s32.totalorder %s13, 1
      %p30 = por %p28, %p29
      %p31 = scmp.ne.s32.totalorder %s23, %s26
      %p32 = scmp.eq.s32.totalorder %s13, 0
      %p33 = por %p31, %p32
      %p34 = scmp.ne.s32.totalorder %s23, %s26
      %p35 = scmp.eq.s32.totalorder %s18, 1
      %p36 = por %p34, %p35
      %p37 = scmp.ne.s32.totalorder %s26, %s27
      %p38 = scmp.eq.s32.totalorder %s18, 0
      %p39 = por %p37, %p38
      %p40 = scmp.ne.s32.totalorder %s26, %s27
      %p41 = scmp.eq.s32.totalorder %s19, 1
      %p42 = por %p40, %p41
      %p44 = scmp.ne.s32.totalorder %s27, %s43
      %p45 = scmp.eq.s32.totalorder %s19, 0
      %p46 = por %p44, %p45
      %s48 = sadd.s32 %s47, 1
      %p51 = scmp.eq.s32.totalorder %s13, 1
      %p52 = scmp.ne.s32.totalorder %s47, %s49
      %p53 = scmp.eq.s32.totalorder %s13, 0
      %p54 = por %p52, %p53
      %p55 = scmp.ne.s32.totalorder %s47, %s49
      %p56 = scmp.eq.s32.totalorder %s18, 1
      %p57 = por %p55, %p56
      %p58 = scmp.ne.s32.totalorder %s49, %s50
      %p59 = scmp.eq.s32.totalorder %s18, 0
      %p60 = por %p58, %p59
      %p61 = scmp.ne.s32.totalorder %s49, %s50
      %p62 = scmp.eq.s32.totalorder %s19, 1
      %p63 = por %p61, %p62
      %p65 = scmp.ne.s32.totalorder %s50, %s64
      %p66 = scmp.eq.s32.totalorder %s19, 0
      %p67 = por %p65, %p66
      %s69 = sadd.s32 %s68, 1
      %p72 = scmp.eq.s32.totalorder %s13, 1
      %p73 = scmp.ne.s32.totalorder %s68, %s70
      %p74 = scmp.eq.s32.totalorder %s13, 0
      %p75 = por %p73, %p74
      %p76 = scmp.ne.s32.totalorder %s68, %s70
      %p77 = scmp.eq.s32.totalorder %s18, 1
      %p78 = por %p76, %p77
      %p79 = scmp.ne.s32.totalorder %s70, %s71
      %p80 = scmp.eq.s32.totalorder %s18, 0
      %p81 = por %p79, %p80
      %p82 = scmp.ne.s32.totalorder %s70, %s71
      %p83 = scmp.eq.s32.totalorder %s19, 1
      %p84 = por %p82, %p83
      %p86 = scmp.ne.s32.totalorder %s71, %s85
      %p87 = scmp.eq.s32.totalorder %s19, 0
      %p88 = por %p86, %p87
      %s90 = sadd.s32 %s89, 1
      %p93 = scmp.eq.s32.totalorder %s13, 1
      %p94 = scmp.ne.s32.totalorder %s89, %s91
      %p95 = scmp.eq.s32.totalorder %s13, 0
      %p96 = por %p94, %p95
      %p97 = scmp.ne.s32.totalorder %s89, %s91
      %p98 = scmp.eq.s32.totalorder %s18, 1
      %p99 = por %p97, %p98
      %p100 = scmp.ne.s32.totalorder %s91, %s92
      %p101 = scmp.eq.s32.totalorder %s18, 0
      %p102 = por %p100, %p101
      %p103 = scmp.ne.s32.totalorder %s91, %s92
      %p104 = scmp.eq.s32.totalorder %s19, 1
      %p105 = por %p103, %p104
      %p107 = scmp.ne.s32.totalorder %s92, %s106
      %p108 = scmp.eq.s32.totalorder %s19, 0
      %p109 = por %p107, %p108
      %s111 = sadd.s32 %s110, 1
      %p114 = scmp.eq.s32.totalorder %s13, 1
      %p115 = scmp.ne.s32.totalorder %s110, %s112
      %p116 = scmp.eq.s32.totalorder %s13, 0
      %p117 = por %p115, %p116
      %p118 = scmp.ne.s32.totalorder %s110, %s112
      %p119 = scmp.eq.s32.totalorder %s18, 1
      %p120 = por %p118, %p119
      %p121 = scmp.ne.s32.totalorder %s112, %s113
      %p122 = scmp.eq.s32.totalorder %s18, 0
      %p123 = por %p121, %p122
      %p124 = scmp.ne.s32.totalorder %s112, %s113
      %p125 = scmp.eq.s32.totalorder %s19, 1
      %p126 = por %p124, %p125
      %p128 = scmp.ne.s32.totalorder %s113, %s127
      %p129 = scmp.eq.s32.totalorder %s19, 0
      %p130 = por %p128, %p129
      %s132 = sadd.s32 %s131, 1
      %p135 = scmp.eq.s32.totalorder %s13, 1
      %p136 = scmp.ne.s32.totalorder %s131, %s133
      %p137 = scmp.eq.s32.totalorder %s13, 0
      %p138 = por %p136, %p137
      %p139 = scmp.ne.s32.totalorder %s131, %s133
      %p140 = scmp.eq.s32.totalorder %s18, 1
      %p141 = por %p139, %p140
      %p142 = scmp.ne.s32.totalorder %s133, %s134
      %p143 = scmp.eq.s32.totalorder %s18, 0
      %p144 = por %p142, %p143
      %p145 = scmp.ne.s32.totalorder %s133, %s134
      %p146 = scmp.eq.s32.totalorder %s19, 1
      %p147 = por %p145, %p146
      %p149 = scmp.ne.s32.totalorder %s134, %s148
      %p150 = scmp.eq.s32.totalorder %s19, 0
      %p151 = por %p149, %p150
      %s153 = sadd.s32 %s152, 1
      %p156 = scmp.eq.s32.totalorder %s13, 1
      %p157 = scmp.ne.s32.totalorder %s152, %s154
      %p158 = scmp.eq.s32.totalorder %s13, 0
      %p159 = por %p157, %p158
      %p160 = scmp.ne.s32.totalorder %s152, %s154
      %p161 = scmp.eq.s32.totalorder %s18, 1
      %p162 = por %p160, %p161
      %p163 = scmp.ne.s32.totalorder %s154, %s155
      %p164 = scmp.eq.s32.totalorder %s18, 0
      %p165 = por %p163, %p164
      %p166 = scmp.ne.s32.totalorder %s154, %s155
      %p167 = scmp.eq.s32.totalorder %s19, 1
      %p168 = por %p166, %p167
      %p170 = scmp.ne.s32.totalorder %s155, %s169
      %p171 = scmp.eq.s32.totalorder %s19, 0
      %p172 = por %p170, %p171
      %s173 = ssub.s32 %s13, %s20
      %p174 = scmp.eq.s32.totalorder %s173, 0
      %s176 = sadd.s32 %s175, 1
      %s177 = scalar_select %p174, %s175, %s176
      %p180 = pneg %p174
      %p181 = scmp.eq.s32.totalorder %s13, 1
      %p182 = por %p180, %p181
      %p183 = scmp.ne.s32.totalorder %s175, %s178
      %p184 = scmp.eq.s32.totalorder %s13, 0
      %p185 = por %p183, %p184
      %p186 = scmp.ne.s32.totalorder %s175, %s178
      %p187 = scmp.eq.s32.totalorder %s18, 1
      %p188 = por %p186, %p187
      %p189 = scmp.ne.s32.totalorder %s178, %s179
      %p190 = scmp.eq.s32.totalorder %s18, 0
      %p191 = por %p189, %p190
      %p192 = scmp.ne.s32.totalorder %s178, %s179
      %p193 = scmp.eq.s32.totalorder %s19, 1
      %p194 = por %p192, %p193
      %p196 = scmp.ne.s32.totalorder %s179, %s195
      %p197 = scmp.eq.s32.totalorder %s19, 0
      %p198 = por %p196, %p197
      %p199 = scmp.le.s32.totalorder 1, %s13
      %p200 = scmp.lt.s32.totalorder %s13, 3
      %p201 = pnand %p199, %p200
      %p202 = pneg %p201
      // Predicated region
      $region9: #{tpu_custom_call.1} parent=5 // pred_check
        _
      $region10: #{tpu_custom_call.1} parent=5 // pred_check_branch
        %204 = sbr.rel (%p201) target = $region12
      $region11: #{tpu_custom_call.1} parent=5 // pred_region
        %s205 = ssub.s32 %s13, 1
        // Predicated region
        $region13: #{tpu_custom_call.1} parent=11 // pred_check
          %p206 = pneg %p60
        $region14: #{tpu_custom_call.1} parent=11 // pred_check_branch
          %208 = sbr.rel (%p206) target = $region16
        $region15: #{tpu_custom_call.1} parent=11 // pred_region
          _
        $region16: #{tpu_custom_call.1} parent=11 // pred_fallthru
          _
        // Predicated region
        $region17: #{tpu_custom_call.1} parent=11 // pred_check
          %p209 = pneg %p81
        $region18: #{tpu_custom_call.1} parent=11 // pred_check_branch
          %211 = sbr.rel (%p209) target = $region20
        $region19: #{tpu_custom_call.1} parent=11 // pred_region
          _
        $region20: #{tpu_custom_call.1} parent=11 // pred_fallthru
          _
        // Predicated region
        $region21: #{tpu_custom_call.1} parent=11 // pred_check
          %p212 = pneg %p102
        $region22: #{tpu_custom_call.1} parent=11 // pred_check_branch
          %214 = sbr.rel (%p212) target = $region24
        $region23: #{tpu_custom_call.1} parent=11 // pred_region
          _
        $region24: #{tpu_custom_call.1} parent=11 // pred_fallthru
          _
        // Predicated region
        $region25: #{tpu_custom_call.1} parent=11 // pred_check
          %p215 = pneg %p123
        $region26: #{tpu_custom_call.1} parent=11 // pred_check_branch
          %217 = sbr.rel (%p215) target = $region28
        $region27: #{tpu_custom_call.1} parent=11 // pred_region
          _
        $region28: #{tpu_custom_call.1} parent=11 // pred_fallthru
          _
        // Predicated region
        $region29: #{tpu_custom_call.1} parent=11 // pred_check
          %p218 = pneg %p144
        $region30: #{tpu_custom_call.1} parent=11 // pred_check_branch
          %220 = sbr.rel (%p218) target = $region32
        $region31: #{tpu_custom_call.1} parent=11 // pred_region
          _
        $region32: #{tpu_custom_call.1} parent=11 // pred_fallthru
          _
        // Predicated region
        $region33: #{tpu_custom_call.1} parent=11 // pred_check
          %p221 = pneg %p165
        $region34: #{tpu_custom_call.1} parent=11 // pred_check_branch
          %223 = sbr.rel (%p221) target = $region36
        $region35: #{tpu_custom_call.1} parent=11 // pred_region
          _
        $region36: #{tpu_custom_call.1} parent=11 // pred_fallthru
          _
      $region12: #{tpu_custom_call.1} parent=5 // pred_fallthru
        _
      %p224 = scmp.lt.s32.totalorder %s13, 2
      // Predicated region
      $region37: #{tpu_custom_call.1} parent=5 // pred_check
        %p225 = pneg %p224
      $region38: #{tpu_custom_call.1} parent=5 // pred_check_branch
        %227 = sbr.rel (%p225) target = $region40
      $region39: #{tpu_custom_call.1} parent=5 // pred_region
        // Predicated region
        $region41: #{tpu_custom_call.1} parent=39 // pred_check
          %p228 = pneg %p33
        $region42: #{tpu_custom_call.1} parent=39 // pred_check_branch
          %230 = sbr.rel (%p228) target = $region44
        $region43: #{tpu_custom_call.1} parent=39 // pred_region
          %s231 = smul.u32 8, %s13
          %s232 = ssub.s32 15, %s231
          %p233 = scmp.lt.s32.totalorder %s232, 8
          %s234 = scalar_select %p233, %s232, 8
          %s235 = smul.u32 64, %s234
          %p236 = scmp.lt.s32.totalorder %s231, 14
          %s237 = scalar_select %p236, %s231, 14
          %s238 = smul.addr %s237, 4
          %s239 = scalar_lea.vmem %s0, %s238
          %s240 = smul.u32 8, %s13
          %s241 = ssub.s32 15, %s240
          %p242 = scmp.lt.s32.totalorder %s241, 8
          %s243 = scalar_select %p242, %s241, 8
          %s244 = smul.u32 64, %s243
        $region44: #{tpu_custom_call.1} parent=39 // pred_fallthru
          _
      $region40: #{tpu_custom_call.1} parent=5 // pred_fallthru
        _
      %p245 = scmp.le.s32.totalorder 1, %s13
      %p246 = scmp.lt.s32.totalorder %s13, 3
      %p247 = pnand %p245, %p246
      %p248 = pneg %p247
      // Predicated region
      $region45: #{tpu_custom_call.1} parent=5 // pred_check
        _
      $region46: #{tpu_custom_call.1} parent=5 // pred_check_branch
        %250 = sbr.rel (%p247) target = $region48
      $region47: #{tpu_custom_call.1} parent=5 // pred_region
        %s251 = ssub.s32 %s13, 1
        %s252 = smul.u32 8, %s18
        %s253 = ssub.s32 15, %s252
        %p254 = scmp.lt.s32.totalorder %s253, 8
        %s255 = scalar_select %p254, %s253, 8
        %s256 = smul.u32 64, %s255
        %p257 = scmp.lt.s32.totalorder %s252, 14
        %s258 = scalar_select %p257, %s252, 14
        %s259 = smul.addr %s258, 4
        %s260 = scalar_lea.vmem %s0, %s259
        %p261 = pneg %p39
        %p262 = pneg %p36
        %p263 = pneg %p60
        %p264 = pneg %p57
        %p265 = pneg %p81
        %p266 = pneg %p78
        %p267 = pneg %p102
        %p268 = pneg %p99
        %p269 = pneg %p123
        %p270 = pneg %p120
        %p271 = pneg %p144
        %p272 = pneg %p141
        %p273 = pneg %p165
        %p274 = pneg %p162
        %p275 = pneg %p191
        %p276 = pneg %p188
        %s277 = sand.u32 %s178, 1
        %s278 = sand.u32 %s178, 1
        %s279 = smul.addr %s278, 64
        %s280 = scalar_lea.vmem [#allocation2], %s279
        %s281 = smul.u32 8, %s18
        %s282 = ssub.s32 15, %s281
        %p283 = scmp.lt.s32.totalorder %s282, 8
        %s284 = scalar_select %p283, %s282, 8
        %s285 = smul.u32 64, %s284
        %p286 = scmp.lt.s32.totalorder %s281, 14
        %s287 = scalar_select %p286, %s281, 14
        %s288 = smul.addr %s287, 4
        %s289 = scalar_lea.vmem %s0, %s288
        %s290 = smul.u32 8, %s18
        %s291 = ssub.s32 15, %s290
        %p292 = scmp.lt.s32.totalorder %s291, 8
        %s293 = scalar_select %p292, %s291, 8
        %s294 = smul.u32 64, %s293
        %s295 = smul.u32 8, %s18
        %s296 = ssub.s32 15, %s295
        %p297 = scmp.lt.s32.totalorder %s296, 8
        %s298 = scalar_select %p297, %s296, 8
        %s299 = smul.u32 128, %s298
        %v301 = vld [vmem:[%s289] sm:$0xf]
        %v302 = vld [vmem:[%s289 + $0x4] sm:$0xf]
        %v303 = vld [vmem:[%s289 + $0x8] sm:$0xf]
        %v304 = vld [vmem:[%s289 + $0xc] sm:$0xf]
        %v305 = vld [vmem:[%s289 + $0x10] sm:$0xf]
        %v306 = vld [vmem:[%s289 + $0x14] sm:$0xf]
        %v307 = vld [vmem:[%s289 + $0x18] sm:$0xf]
        %v308 = vld [vmem:[%s289 + $0x1c] sm:$0xf]
        %v309 = vld [vmem:[%s1] sm:$0xf]
        %v310 = vld [vmem:[%s1 + $0x4] sm:$0xf]
        %v311 = vld [vmem:[%s1 + $0x8] sm:$0xf]
        %v312 = vld [vmem:[%s1 + $0xc] sm:$0xf]
        %v313 = vld [vmem:[%s1 + $0x10] sm:$0xf]
        %v314 = vld [vmem:[%s1 + $0x14] sm:$0xf]
        %v315 = vld [vmem:[%s2] sm:$0x1]
        %v317 = vlaneseq
        %v318 = vshrl.u32 %v317, 7
        %v319 = vsub.s32 0, %v318
        %v320 = vrot.slane %v315, %v319
        %v330 = vunpack.c.l.b16 %v301
        %v331 = vunpack.c.l.b16 %v302
        %v332 = vunpack.c.l.b16 %v303
        %v333 = vunpack.c.l.b16 %v304
        %v334 = vunpack.c.l.b16 %v305
        %v335 = vunpack.c.l.b16 %v306
        %v336 = vunpack.c.l.b16 %v307
        %v337 = vunpack.c.l.b16 %v308
        %v338 = vpack.c.b16 %v331, %v330
        %v339 = vpack.c.b16 %v333, %v332
        %v340 = vpack.c.b16 %v335, %v334
        %v341 = vpack.c.b16 %v337, %v336
        %v348 = vunpack.c.l.b16 %v309
        %v349 = vunpack.c.l.b16 %v310
        %v350 = vunpack.c.l.b16 %v311
        %v351 = vunpack.c.l.b16 %v312
        %v352 = vunpack.c.l.b16 %v313
        %v353 = vunpack.c.l.b16 %v314
        %v354 = vpack.c.b16 %v349, %v348
        %v355 = vpack.c.b16 %v351, %v350
        %v356 = vpack.c.b16 %v353, %v352
        %vm360 = vcmask 392192
        %v362 = vsel %vm360, %v338, 0
        %v365 = vsel %vm360, %v339, 0
        %v368 = vsel %vm360, %v340, 0
        %v371 = vsel %vm360, %v341, 0
        %373 = vmatprep.subr.bf16.mxu0 0
        %374 = vmatpush1.bf16.msra.mxu0 %v354
        %375 = vmatprep.subr.bf16.mxu0 0
        %376 = vmatpush1.bf16.msra.mxu0 %v355
        %377 = vmatprep.subr.bf16.mxu0 0
        %378 = vmatpush1.bf16.msra.mxu0 %v356
        %379 = vmatprep.subr.bf16.mxu0 0
        %380 = vmatpush1.bf16.msra.mxu0 0
        %381 = vmatprep.subr.bf16.mxu0 0
        %382 = vmatpush1.bf16.msra.mxu0 0
        %383 = vmatprep.subr.bf16.mxu0 0
        %384 = vmatpush1.bf16.msra.mxu0 0
        %385 = vmatprep.subr.bf16.mxu0 0
        %386 = vmatpush1.bf16.msra.mxu0 0
        %387 = vmatprep.subr.bf16.mxu0 0
        %388 = vmatpush1.bf16.msra.mxu0 0
        %389 = vmatprep.subr.bf16.mxu0 0
        %390 = vmatpush1.bf16.msra.mxu0 0
        %391 = vmatprep.subr.bf16.mxu0 0
        %392 = vmatpush1.bf16.msra.mxu0 0
        %393 = vmatprep.subr.bf16.mxu0 0
        %394 = vmatpush1.bf16.msra.mxu0 0
        %395 = vmatprep.subr.bf16.mxu0 0
        %396 = vmatpush1.bf16.msra.mxu0 0
        %397 = vmatprep.subr.bf16.mxu0 0
        %398 = vmatpush1.bf16.msra.mxu0 0
        %399 = vmatprep.subr.bf16.mxu0 0
        %400 = vmatpush1.bf16.msra.mxu0 0
        %401 = vmatprep.subr.bf16.mxu0 0
        %402 = vmatpush1.bf16.msra.mxu0 0
        %403 = vmatprep.subr.bf16.mxu0 0
        %404 = vmatpush1.bf16.msra.mxu0 0
        %405 = vmatprep.mubr.bf16.mxu0 0
        %406 = vmatmul.mubr.bf16.gmra.mrb[0].mxu0 %v362
        %v407 = vpop.f32.mrb[0].mxu0
        %v408 = vadd.f32 %v320, %v407
        %v409 = vpop.f32.mrb[0].mxu0
        %v410 = vpop.f32.mrb[0].mxu0
        %v411 = vadd.f32 %v320, %v410
        %v412 = vpop.f32.mrb[0].mxu0
        %413 = vmatprep.mubr.bf16.mxu0 0
        %414 = vmatmul.mubr.bf16.gmra.mrb[0].mxu0 %v365
        %v415 = vpop.f32.mrb[0].mxu0
        %v416 = vadd.f32 %v320, %v415
        %v417 = vpop.f32.mrb[0].mxu0
        %v418 = vpop.f32.mrb[0].mxu0
        %v419 = vadd.f32 %v320, %v418
        %v420 = vpop.f32.mrb[0].mxu0
        %421 = vmatprep.mubr.bf16.mxu0 0
        %422 = vmatmul.mubr.bf16.gmra.mrb[0].mxu0 %v368
        %v423 = vpop.f32.mrb[0].mxu0
        %v424 = vadd.f32 %v320, %v423
        %v425 = vpop.f32.mrb[0].mxu0
        %v426 = vpop.f32.mrb[0].mxu0
        %v427 = vadd.f32 %v320, %v426
        %v428 = vpop.f32.mrb[0].mxu0
        %429 = vmatprep.mubr.bf16.mxu0 0
        %430 = vmatmul.mubr.bf16.gmra.mrb[0].mxu0 %v371
        %v431 = vpop.f32.mrb[0].mxu0
        %v432 = vadd.f32 %v320, %v431
        %v433 = vpop.f32.mrb[0].mxu0
        %v434 = vpop.f32.mrb[0].mxu0
        %v435 = vadd.f32 %v320, %v434
        %v436 = vpop.f32.mrb[0].mxu0
        %437 = vdwg.mxu0
        %v438 = vxor.u32 %v408, 2147483648
        %v439 = vxor.u32 %v411, 2147483648
        %v440 = vxor.u32 %v416, 2147483648
        %v441 = vxor.u32 %v419, 2147483648
        %v442 = vxor.u32 %v424, 2147483648
        %v443 = vxor.u32 %v427, 2147483648
        %v444 = vxor.u32 %v432, 2147483648
        %v445 = vxor.u32 %v435, 2147483648
        %v446 = vmul.f32 %v438, 1.442695
        %v447 = vpow.pop %v446
        %v448 = vmul.f32 %v439, 1.442695
        %v449 = vpow.pop %v448
        %v450 = vmul.f32 %v440, 1.442695
        %v451 = vpow.pop %v450
        %v452 = vmul.f32 %v441, 1.442695
        %v453 = vpow.pop %v452
        %v454 = vmul.f32 %v442, 1.442695
        %v455 = vpow.pop %v454
        %v456 = vmul.f32 %v443, 1.442695
        %v457 = vpow.pop %v456
        %v458 = vmul.f32 %v444, 1.442695
        %v459 = vpow.pop %v458
        %v460 = vmul.f32 %v445, 1.442695
        %v461 = vpow.pop %v460
        %v462 = vadd.f32 %v447, 1.0
        %v463 = vadd.f32 %v449, 1.0
        %v464 = vadd.f32 %v451, 1.0
        %v465 = vadd.f32 %v453, 1.0
        %v466 = vadd.f32 %v455, 1.0
        %v467 = vadd.f32 %v457, 1.0
        %v468 = vadd.f32 %v459, 1.0
        %v469 = vadd.f32 %v461, 1.0
        %v470 = vrcp.pop %v462
        %v471 = vmul.f32 1.0, %v470
        %v472 = vrcp.pop %v463
        %v473 = vmul.f32 1.0, %v472
        %v474 = vrcp.pop %v464
        %v475 = vmul.f32 1.0, %v474
        %v476 = vrcp.pop %v465
        %v477 = vmul.f32 1.0, %v476
        %v478 = vrcp.pop %v466
        %v479 = vmul.f32 1.0, %v478
        %v480 = vrcp.pop %v467
        %v481 = vmul.f32 1.0, %v480
        %v482 = vrcp.pop %v468
        %v483 = vmul.f32 1.0, %v482
        %v484 = vrcp.pop %v469
        %v485 = vmul.f32 1.0, %v484
        %v486 = vmul.f32 %v408, %v471
        %v487 = vmul.f32 %v411, %v473
        %v488 = vmul.f32 %v416, %v475
        %v489 = vmul.f32 %v419, %v477
        %v490 = vmul.f32 %v424, %v479
        %v491 = vmul.f32 %v427, %v481
        %v492 = vmul.f32 %v432, %v483
        %v493 = vmul.f32 %v435, %v485
        %v494 = vpack.c.bf16 %v487, %v486
        %v495 = vpack.c.bf16 %v489, %v488
        %v496 = vpack.c.bf16 %v491, %v490
        %v497 = vpack.c.bf16 %v493, %v492
        %v498 = vld [vmem:[%s3] sm:$0xf]
        %v499 = vld [vmem:[%s3 + $0x4] sm:$0xf]
        %v500 = vld [vmem:[%s3 + $0x8] sm:$0xf]
        %v501 = vld [vmem:[%s3 + $0xc] sm:$0xf]
        %v502 = vld [vmem:[%s3 + $0x10] sm:$0xf]
        %v503 = vld [vmem:[%s3 + $0x14] sm:$0xf]
        %v504 = vld [vmem:[%s3 + $0x18] sm:$0xf]
        %v505 = vld [vmem:[%s3 + $0x1c] sm:$0xf]
        %v506 = vld [vmem:[%s4] sm:$0x1]
        %v508 = vlaneseq
        %v509 = vshrl.u32 %v508, 7
        %v510 = vsub.s32 0, %v509
        %v511 = vrot.slane %v506, %v510
        %v521 = vunpack.c.l.b16 %v498
        %v522 = vunpack.c.l.b16 %v499
        %v523 = vunpack.c.l.b16 %v500
        %v524 = vunpack.c.l.b16 %v501
        %v525 = vunpack.c.l.b16 %v502
        %v526 = vunpack.c.l.b16 %v503
        %v527 = vunpack.c.l.b16 %v504
        %v528 = vunpack.c.l.b16 %v505
        %v529 = vpack.c.b16 %v522, %v521
        %v530 = vpack.c.b16 %v524, %v523
        %v531 = vpack.c.b16 %v526, %v525
        %v532 = vpack.c.b16 %v528, %v527
        %vm537 = vcmask 523264
        %v539 = vsel %vm537, %v494, 0
        %v542 = vsel %vm537, %v495, 0
        %v545 = vsel %vm537, %v496, 0
        %v548 = vsel %vm537, %v497, 0
        %550 = vmatprep.subr.bf16.mxu0 0
        %551 = vmatpush1.bf16.msra.mxu0 %v529
        %552 = vmatprep.subr.bf16.mxu0 0
        %553 = vmatpush1.bf16.msra.mxu0 %v530
        %554 = vmatprep.subr.bf16.mxu0 0
        %555 = vmatpush1.bf16.msra.mxu0 %v531
        %556 = vmatprep.subr.bf16.mxu0 0
        %557 = vmatpush1.bf16.msra.mxu0 %v532
        %558 = vmatprep.subr.bf16.mxu0 0
        %559 = vmatpush1.bf16.msra.mxu0 0
        %560 = vmatprep.subr.bf16.mxu0 0
        %561 = vmatpush1.bf16.msra.mxu0 0
        %562 = vmatprep.subr.bf16.mxu0 0
        %563 = vmatpush1.bf16.msra.mxu0 0
        %564 = vmatprep.subr.bf16.mxu0 0
        %565 = vmatpush1.bf16.msra.mxu0 0
        %566 = vmatprep.subr.bf16.mxu0 0
        %567 = vmatpush1.bf16.msra.mxu0 0
        %568 = vmatprep.subr.bf16.mxu0 0
        %569 = vmatpush1.bf16.msra.mxu0 0
        %570 = vmatprep.subr.bf16.mxu0 0
        %571 = vmatpush1.bf16.msra.mxu0 0
        %572 = vmatprep.subr.bf16.mxu0 0
        %573 = vmatpush1.bf16.msra.mxu0 0
        %574 = vmatprep.subr.bf16.mxu0 0
        %575 = vmatpush1.bf16.msra.mxu0 0
        %576 = vmatprep.subr.bf16.mxu0 0
        %577 = vmatpush1.bf16.msra.mxu0 0
        %578 = vmatprep.subr.bf16.mxu0 0
        %579 = vmatpush1.bf16.msra.mxu0 0
        %580 = vmatprep.subr.bf16.mxu0 0
        %581 = vmatpush1.bf16.msra.mxu0 0
        %582 = vmatprep.mubr.bf16.mxu0 0
        %583 = vmatmul.mubr.bf16.gmra.mrb[0].mxu0 %v539
        %v584 = vpop.f32.mrb[0].mxu0
        %v585 = vadd.f32 %v511, %v584
        %v586 = vpop.f32.mrb[0].mxu0
        %v587 = vpop.f32.mrb[0].mxu0
        %v588 = vadd.f32 %v511, %v587
        %v589 = vpop.f32.mrb[0].mxu0
        %590 = vmatprep.mubr.bf16.mxu0 0
        %591 = vmatmul.mubr.bf16.gmra.mrb[0].mxu0 %v542
        %v592 = vpop.f32.mrb[0].mxu0
        %v593 = vadd.f32 %v511, %v592
        %v594 = vpop.f32.mrb[0].mxu0
        %v595 = vpop.f32.mrb[0].mxu0
        %v596 = vadd.f32 %v511, %v595
        %v597 = vpop.f32.mrb[0].mxu0
        %598 = vmatprep.mubr.bf16.mxu0 0
        %599 = vmatmul.mubr.bf16.gmra.mrb[0].mxu0 %v545
        %v600 = vpop.f32.mrb[0].mxu0
        %v601 = vadd.f32 %v511, %v600
        %v602 = vpop.f32.mrb[0].mxu0
        %v603 = vpop.f32.mrb[0].mxu0
        %v604 = vadd.f32 %v511, %v603
        %v605 = vpop.f32.mrb[0].mxu0
        %606 = vmatprep.mubr.bf16.mxu0 0
        %607 = vmatmul.mubr.bf16.gmra.mrb[0].mxu0 %v548
        %v608 = vpop.f32.mrb[0].mxu0
        %v609 = vadd.f32 %v511, %v608
        %v610 = vpop.f32.mrb[0].mxu0
        %v611 = vpop.f32.mrb[0].mxu0
        %v612 = vadd.f32 %v511, %v611
        %v613 = vpop.f32.mrb[0].mxu0
        %614 = vdwg.mxu0
        %v615 = vxor.u32 %v585, 2147483648
        %v616 = vxor.u32 %v588, 2147483648
        %v617 = vxor.u32 %v593, 2147483648
        %v618 = vxor.u32 %v596, 2147483648
        %v619 = vxor.u32 %v601, 2147483648
        %v620 = vxor.u32 %v604, 2147483648
        %v621 = vxor.u32 %v609, 2147483648
        %v622 = vxor.u32 %v612, 2147483648
        %v623 = vmul.f32 %v615, 1.442695
        %v624 = vpow.pop %v623
        %v625 = vmul.f32 %v616, 1.442695
        %v626 = vpow.pop %v625
        %v627 = vmul.f32 %v617, 1.442695
        %v628 = vpow.pop %v627
        %v629 = vmul.f32 %v618, 1.442695
        %v630 = vpow.pop %v629
        %v631 = vmul.f32 %v619, 1.442695
        %v632 = vpow.pop %v631
        %v633 = vmul.f32 %v620, 1.442695
        %v634 = vpow.pop %v633
        %v635 = vmul.f32 %v621, 1.442695
        %v636 = vpow.pop %v635
        %v637 = vmul.f32 %v622, 1.442695
        %v638 = vpow.pop %v637
        %v639 = vadd.f32 %v624, 1.0
        %v640 = vadd.f32 %v626, 1.0
        %v641 = vadd.f32 %v628, 1.0
        %v642 = vadd.f32 %v630, 1.0
        %v643 = vadd.f32 %v632, 1.0
        %v644 = vadd.f32 %v634, 1.0
        %v645 = vadd.f32 %v636, 1.0
        %v646 = vadd.f32 %v638, 1.0
        %v647 = vrcp.pop %v639
        %v648 = vmul.f32 1.0, %v647
        %v649 = vrcp.pop %v640
        %v650 = vmul.f32 1.0, %v649
        %v651 = vrcp.pop %v641
        %v652 = vmul.f32 1.0, %v651
        %v653 = vrcp.pop %v642
        %v654 = vmul.f32 1.0, %v653
        %v655 = vrcp.pop %v643
        %v656 = vmul.f32 1.0, %v655
        %v657 = vrcp.pop %v644
        %v658 = vmul.f32 1.0, %v657
        %v659 = vrcp.pop %v645
        %v660 = vmul.f32 1.0, %v659
        %v661 = vrcp.pop %v646
        %v662 = vmul.f32 1.0, %v661
        %v663 = vmul.f32 %v585, %v648
        %v664 = vmul.f32 %v588, %v650
        %v665 = vmul.f32 %v593, %v652
        %v666 = vmul.f32 %v596, %v654
        %v667 = vmul.f32 %v601, %v656
        %v668 = vmul.f32 %v604, %v658
        %v669 = vmul.f32 %v609, %v660
        %v670 = vmul.f32 %v612, %v662
        %v671 = vpack.c.bf16 %v664, %v663
        %v672 = vpack.c.bf16 %v666, %v665
        %v673 = vpack.c.bf16 %v668, %v667
        %v674 = vpack.c.bf16 %v670, %v669
        %v675 = vld [vmem:[%s5] sm:$0xf]
        %v676 = vld [vmem:[%s5 + $0x4] sm:$0xf]
        %v677 = vld [vmem:[%s5 + $0x8] sm:$0xf]
        %v678 = vld [vmem:[%s5 + $0xc] sm:$0xf]
        %v679 = vld [vmem:[%s5 + $0x10] sm:$0xf]
        %v680 = vld [vmem:[%s5 + $0x14] sm:$0xf]
        %v681 = vld [vmem:[%s5 + $0x18] sm:$0xf]
        %v682 = vld [vmem:[%s5 + $0x1c] sm:$0xf]
        %v683 = vld [vmem:[%s6] sm:$0x1]
        %v685 = vlaneseq
        %v686 = vshrl.u32 %v685, 7
        %v687 = vsub.s32 0, %v686
        %v688 = vrot.slane %v683, %v687
        %v698 = vunpack.c.l.b16 %v675
        %v699 = vunpack.c.l.b16 %v676
        %v700 = vunpack.c.l.b16 %v677
        %v701 = vunpack.c.l.b16 %v678
        %v702 = vunpack.c.l.b16 %v679
        %v703 = vunpack.c.l.b16 %v680
        %v704 = vunpack.c.l.b16 %v681
        %v705 = vunpack.c.l.b16 %v682
        %v706 = vpack.c.b16 %v699, %v698
        %v707 = vpack.c.b16 %v701, %v700
        %v708 = vpack.c.b16 %v703, %v702
        %v709 = vpack.c.b16 %v705, %v704
        %v715 = vsel %vm537, %v671, 0
        %v718 = vsel %vm537, %v672, 0
        %v721 = vsel %vm537, %v673, 0
        %v724 = vsel %vm537, %v674, 0
        %726 = vmatprep.subr.bf16.mxu0 0
        %727 = vmatpush1.bf16.msra.mxu0 %v706
        %728 = vmatprep.subr.bf16.mxu0 0
        %729 = vmatpush1.bf16.msra.mxu0 %v707
        %730 = vmatprep.subr.bf16.mxu0 0
        %731 = vmatpush1.bf16.msra.mxu0 %v708
        %732 = vmatprep.subr.bf16.mxu0 0
        %733 = vmatpush1.bf16.msra.mxu0 %v709
        %734 = vmatprep.subr.bf16.mxu0 0
        %735 = vmatpush1.bf16.msra.mxu0 0
        %736 = vmatprep.subr.bf16.mxu0 0
        %737 = vmatpush1.bf16.msra.mxu0 0
        %738 = vmatprep.subr.bf16.mxu0 0
        %739 = vmatpush1.bf16.msra.mxu0 0
        %740 = vmatprep.subr.bf16.mxu0 0
        %741 = vmatpush1.bf16.msra.mxu0 0
        %742 = vmatprep.subr.bf16.mxu0 0
        %743 = vmatpush1.bf16.msra.mxu0 0
        %744 = vmatprep.subr.bf16.mxu0 0
        %745 = vmatpush1.bf16.msra.mxu0 0
        %746 = vmatprep.subr.bf16.mxu0 0
        %747 = vmatpush1.bf16.msra.mxu0 0
        %748 = vmatprep.subr.bf16.mxu0 0
        %749 = vmatpush1.bf16.msra.mxu0 0
        %750 = vmatprep.subr.bf16.mxu0 0
        %751 = vmatpush1.bf16.msra.mxu0 0
        %752 = vmatprep.subr.bf16.mxu0 0
        %753 = vmatpush1.bf16.msra.mxu0 0
        %754 = vmatprep.subr.bf16.mxu0 0
        %755 = vmatpush1.bf16.msra.mxu0 0
        %756 = vmatprep.subr.bf16.mxu0 0
        %757 = vmatpush1.bf16.msra.mxu0 0
        %758 = vmatprep.mubr.bf16.mxu0 0
        %759 = vmatmul.mubr.bf16.gmra.mrb[0].mxu0 %v715
        %v760 = vpop.f32.mrb[0].mxu0
        %v761 = vadd.f32 %v688, %v760
        %v762 = vpop.f32.mrb[0].mxu0
        %v763 = vpop.f32.mrb[0].mxu0
        %v764 = vadd.f32 %v688, %v763
        %v765 = vpop.f32.mrb[0].mxu0
        %766 = vmatprep.mubr.bf16.mxu0 0
        %767 = vmatmul.mubr.bf16.gmra.mrb[0].mxu0 %v718
        %v768 = vpop.f32.mrb[0].mxu0
        %v769 = vadd.f32 %v688, %v768
        %v770 = vpop.f32.mrb[0].mxu0
        %v771 = vpop.f32.mrb[0].mxu0
        %v772 = vadd.f32 %v688, %v771
        %v773 = vpop.f32.mrb[0].mxu0
        %774 = vmatprep.mubr.bf16.mxu0 0
        %775 = vmatmul.mubr.bf16.gmra.mrb[0].mxu0 %v721
        %v776 = vpop.f32.mrb[0].mxu0
        %v777 = vadd.f32 %v688, %v776
        %v778 = vpop.f32.mrb[0].mxu0
        %v779 = vpop.f32.mrb[0].mxu0
        %v780 = vadd.f32 %v688, %v779
        %v781 = vpop.f32.mrb[0].mxu0
        %782 = vmatprep.mubr.bf16.mxu0 0
        %783 = vmatmul.mubr.bf16.gmra.mrb[0].mxu0 %v724
        %v784 = vpop.f32.mrb[0].mxu0
        %v785 = vadd.f32 %v688, %v784
        %v786 = vpop.f32.mrb[0].mxu0
        %v787 = vpop.f32.mrb[0].mxu0
        %v788 = vadd.f32 %v688, %v787
        %v789 = vpop.f32.mrb[0].mxu0
        %790 = vdwg.mxu0
        %vm791 = vcmask 261120
        %792 = vst.msk [vmem:[%s280] sm:$0xff] %vm791, %v761
        %793 = vst.msk [vmem:[%s280 + $0x8] sm:$0xff] %vm791, %v764
        %794 = vst.msk [vmem:[%s280 + $0x10] sm:$0xff] %vm791, %v769
        %795 = vst.msk [vmem:[%s280 + $0x18] sm:$0xff] %vm791, %v772
        %796 = vst.msk [vmem:[%s280 + $0x20] sm:$0xff] %vm791, %v777
        %797 = vst.msk [vmem:[%s280 + $0x28] sm:$0xff] %vm791, %v780
        %798 = vst.msk [vmem:[%s280 + $0x30] sm:$0xff] %vm791, %v785
        %799 = vst.msk [vmem:[%s280 + $0x38] sm:$0xff] %vm791, %v788
        %s800 = sand.u32 %s178, 1
        %s801 = sand.u32 %s178, 1
        %s802 = smul.addr %s801, 64
        %s803 = scalar_lea.vmem [#allocation2], %s802
        // Predicated region
        $region49: #{tpu_custom_call.1} parent=47 // pred_check
          %p804 = pneg %p188
        $region50: #{tpu_custom_call.1} parent=47 // pred_check_branch
          %806 = sbr.rel (%p804) target = $region52
        $region51: #{tpu_custom_call.1} parent=47 // pred_region
          %s807 = smul.u32 8, %s18
          %s808 = ssub.s32 15, %s807
          %p809 = scmp.lt.s32.totalorder %s808, 8
          %s810 = scalar_select %p809, %s808, 8
          %s811 = smul.u32 128, %s810
          %p812 = scmp.ne.s32.totalorder 0, %s811
          %s813 = smul.addr %s807, 8
          %s814 = scalar_lea.vmem %s7, %s813
          // Predicated region
          $region53: #{tpu_custom_call.1} parent=51 // pred_check
            %p815 = pneg %p812
          $region54: #{tpu_custom_call.1} parent=51 // pred_check_branch
            %817 = sbr.rel (%p815) target = $region56
          $region55: #{tpu_custom_call.1} parent=51 // pred_region
            // Predicated region
            $region57: #{tpu_custom_call.1} parent=55 // pred_check
              _
            $region58: #{tpu_custom_call.1} parent=55 // pred_check_branch
              %819 = sbr.rel (0) target = $region60
            $region59: #{tpu_custom_call.1} parent=55 // pred_region
              // Predicated region
              $region79: #{tpu_custom_call.1} parent=59 // pred_check
                _
              $region80: #{tpu_custom_call.1} parent=59 // pred_check_branch
                %882 = sbr.rel (0) target = $region82
              $region81: #{tpu_custom_call.1} parent=59 // pred_region
                %s883 = sshrl.u32 %s810, 3
                // While loop
                $region83: #{tpu_custom_call.1} parent=81 // loop_pre_header
                  _
                $region84: #{tpu_custom_call.1} parent=81 // loop_header
                  %s885 = sphi 0, %s887
                  %p886 = scmp.ge.s32.totalorder %s885, %s883
                  %s890 = sphi 0, %s911
                  %s891 = sphi %s803, %s914
                  %s892 = sphi %s814, %s915
                $region85: #{tpu_custom_call.1} parent=81 // loop_header_branch
                  %889 = sbr.rel (%p886) target = $region89
                $region86: #{tpu_custom_call.1} parent=81 // loop_body
                  %v893 = vld [vmem:[%s891] sm:$0xff]
                  %894 = vst [vmem:[%s892] sm:$0xff] %v893
                  %v895 = vld [vmem:[%s891 + $0x8] sm:$0xff]
                  %896 = vst [vmem:[%s892 + $0x8] sm:$0xff] %v895
                  %v897 = vld [vmem:[%s891 + $0x10] sm:$0xff]
                  %898 = vst [vmem:[%s892 + $0x10] sm:$0xff] %v897
                  %v899 = vld [vmem:[%s891 + $0x18] sm:$0xff]
                  %900 = vst [vmem:[%s892 + $0x18] sm:$0xff] %v899
                  %v901 = vld [vmem:[%s891 + $0x20] sm:$0xff]
                  %902 = vst [vmem:[%s892 + $0x20] sm:$0xff] %v901
                  %v903 = vld [vmem:[%s891 + $0x28] sm:$0xff]
                  %904 = vst [vmem:[%s892 + $0x28] sm:$0xff] %v903
                  %v905 = vld [vmem:[%s891 + $0x30] sm:$0xff]
                  %906 = vst [vmem:[%s892 + $0x30] sm:$0xff] %v905
                  %v907 = vld [vmem:[%s891 + $0x38] sm:$0xff]
                  %908 = vst [vmem:[%s892 + $0x38] sm:$0xff] %v907
                  %s909 = sadd.s32 1, %s890
                  %p910 = scmp.ge.s32.totalorder %s909, %s883
                  %s911 = scalar_select %p910, 0, %s909
                  %s912 = smul.u32 %s911, 64
                  %s913 = smul.u32 %s911, 64
                  %s914 = scalar_lea.vmem %s803, %s912 [#allocation2]
                  %s915 = scalar_lea.vmem %s814, %s913
                $region87: #{tpu_custom_call.1} parent=81 // loop_footer
                  %s887 = sadd.s32 %s885, 1
                $region88: #{tpu_custom_call.1} parent=81 // loop_footer_branch
                  %884 = sbr.rel target = $region84
                $region89: #{tpu_custom_call.1} parent=81 // loop_exit
                  _
                %s916 = sshrl.u32 %s810, 3
                %s917 = sand.u32 %s810, 7
                %s918 = smul.u32 %s916, 8
                %s919 = smul.u32 8, %s918
                %s920 = scalar_lea.vmem %s803, %s919 [#allocation2]
                %s921 = smul.u32 8, %s918
                %s922 = scalar_lea.vmem %s814, %s921
                // While loop
                $region90: #{tpu_custom_call.1} parent=81 // loop_pre_header
                  _
                $region91: #{tpu_custom_call.1} parent=81 // loop_header
                  %s924 = sphi 0, %s926
                  %p925 = scmp.ge.s32.totalorder %s924, %s917
                  %s929 = sphi 0, %s936
                  %s930 = sphi %s920, %s939
                  %s931 = sphi %s922, %s940
                $region92: #{tpu_custom_call.1} parent=81 // loop_header_branch
                  %928 = sbr.rel (%p925) target = $region96
                $region93: #{tpu_custom_call.1} parent=81 // loop_body
                  %v932 = vld [vmem:[%s930] sm:$0xff]
                  %933 = vst [vmem:[%s931] sm:$0xff] %v932
                  %s934 = sadd.s32 1, %s929
                  %p935 = scmp.ge.s32.totalorder %s934, %s917
                  %s936 = scalar_select %p935, 0, %s934
                  %s937 = smul.u32 %s936, 8
                  %s938 = smul.u32 %s936, 8
                  %s939 = scalar_lea.vmem %s920, %s937 [#allocation2]
                  %s940 = scalar_lea.vmem %s922, %s938
                $region94: #{tpu_custom_call.1} parent=81 // loop_footer
                  %s926 = sadd.s32 %s924, 1
                $region95: #{tpu_custom_call.1} parent=81 // loop_footer_branch
                  %923 = sbr.rel target = $region91
                $region96: #{tpu_custom_call.1} parent=81 // loop_exit
                  _
              $region82: #{tpu_custom_call.1} parent=59 // pred_fallthru
                _
              // Predicated region
              $region97: #{tpu_custom_call.1} parent=59 // pred_check
                _
              $region98: #{tpu_custom_call.1} parent=59 // pred_check_branch
                %942 = sbr.rel target = $region100
              $region99: #{tpu_custom_call.1} parent=59 // pred_region
                _
              $region100: #{tpu_custom_call.1} parent=59 // pred_fallthru
                _
            $region60: #{tpu_custom_call.1} parent=55 // pred_fallthru
              _
            // Predicated region
            $region61: #{tpu_custom_call.1} parent=55 // pred_check
              _
            $region62: #{tpu_custom_call.1} parent=55 // pred_check_branch
              %821 = sbr.rel target = $region64
            $region63: #{tpu_custom_call.1} parent=55 // pred_region
              %s823 = sshrl.u32 %s810, 3
              // While loop
              $region65: #{tpu_custom_call.1} parent=63 // loop_pre_header
                _
              $region66: #{tpu_custom_call.1} parent=63 // loop_header
                %s825 = sphi 0, %s827
                %p826 = scmp.ge.s32.totalorder %s825, %s823
                %s830 = sphi 0, %s851
                %s831 = sphi %s803, %s854
                %s832 = sphi %s814, %s855
              $region67: #{tpu_custom_call.1} parent=63 // loop_header_branch
                %829 = sbr.rel (%p826) target = $region71
              $region68: #{tpu_custom_call.1} parent=63 // loop_body
                %v833 = vld [vmem:[%s831] sm:$0xff]
                %834 = vst [vmem:[%s832] sm:$0xff] %v833
                %v835 = vld [vmem:[%s831 + $0x8] sm:$0xff]
                %836 = vst [vmem:[%s832 + $0x8] sm:$0xff] %v835
                %v837 = vld [vmem:[%s831 + $0x10] sm:$0xff]
                %838 = vst [vmem:[%s832 + $0x10] sm:$0xff] %v837
                %v839 = vld [vmem:[%s831 + $0x18] sm:$0xff]
                %840 = vst [vmem:[%s832 + $0x18] sm:$0xff] %v839
                %v841 = vld [vmem:[%s831 + $0x20] sm:$0xff]
                %842 = vst [vmem:[%s832 + $0x20] sm:$0xff] %v841
                %v843 = vld [vmem:[%s831 + $0x28] sm:$0xff]
                %844 = vst [vmem:[%s832 + $0x28] sm:$0xff] %v843
                %v845 = vld [vmem:[%s831 + $0x30] sm:$0xff]
                %846 = vst [vmem:[%s832 + $0x30] sm:$0xff] %v845
                %v847 = vld [vmem:[%s831 + $0x38] sm:$0xff]
                %848 = vst [vmem:[%s832 + $0x38] sm:$0xff] %v847
                %s849 = sadd.s32 1, %s830
                %p850 = scmp.ge.s32.totalorder %s849, %s823
                %s851 = scalar_select %p850, 0, %s849
                %s852 = smul.u32 %s851, 64
                %s853 = smul.u32 %s851, 64
                %s854 = scalar_lea.vmem %s803, %s852 [#allocation2]
                %s855 = scalar_lea.vmem %s814, %s853
              $region69: #{tpu_custom_call.1} parent=63 // loop_footer
                %s827 = sadd.s32 %s825, 1
              $region70: #{tpu_custom_call.1} parent=63 // loop_footer_branch
                %824 = sbr.rel target = $region66
              $region71: #{tpu_custom_call.1} parent=63 // loop_exit
                _
              %s856 = sshrl.u32 %s810, 3
              %s857 = sand.u32 %s810, 7
              %s858 = smul.u32 %s856, 8
              %s859 = smul.u32 8, %s858
              %s860 = scalar_lea.vmem %s803, %s859 [#allocation2]
              %s861 = smul.u32 8, %s858
              %s862 = scalar_lea.vmem %s814, %s861
              // While loop
              $region72: #{tpu_custom_call.1} parent=63 // loop_pre_header
                _
              $region73: #{tpu_custom_call.1} parent=63 // loop_header
                %s864 = sphi 0, %s866
                %p865 = scmp.ge.s32.totalorder %s864, %s857
                %s869 = sphi 0, %s876
                %s870 = sphi %s860, %s879
                %s871 = sphi %s862, %s880
              $region74: #{tpu_custom_call.1} parent=63 // loop_header_branch
                %868 = sbr.rel (%p865) target = $region78
              $region75: #{tpu_custom_call.1} parent=63 // loop_body
                %v872 = vld [vmem:[%s870] sm:$0xff]
                %873 = vst [vmem:[%s871] sm:$0xff] %v872
                %s874 = sadd.s32 1, %s869
                %p875 = scmp.ge.s32.totalorder %s874, %s857
                %s876 = scalar_select %p875, 0, %s874
                %s877 = smul.u32 %s876, 8
                %s878 = smul.u32 %s876, 8
                %s879 = scalar_lea.vmem %s860, %s877 [#allocation2]
                %s880 = scalar_lea.vmem %s862, %s878
              $region76: #{tpu_custom_call.1} parent=63 // loop_footer
                %s866 = sadd.s32 %s864, 1
              $region77: #{tpu_custom_call.1} parent=63 // loop_footer_branch
                %863 = sbr.rel target = $region73
              $region78: #{tpu_custom_call.1} parent=63 // loop_exit
                _
            $region64: #{tpu_custom_call.1} parent=55 // pred_fallthru
              _
          $region56: #{tpu_custom_call.1} parent=51 // pred_fallthru
            _
          %943 = vnop
        $region52: #{tpu_custom_call.1} parent=47 // pred_fallthru
          _
      $region48: #{tpu_custom_call.1} parent=5 // pred_fallthru
        _
      %p944 = scmp.le.s32.totalorder 2, %s13
      // Predicated region
      $region101: #{tpu_custom_call.1} parent=5 // pred_check
        %p945 = pneg %p944
      $region102: #{tpu_custom_call.1} parent=5 // pred_check_branch
        %947 = sbr.rel (%p945) target = $region104
      $region103: #{tpu_custom_call.1} parent=5 // pred_region
        %s948 = ssub.s32 %s13, 2
        // Predicated region
        $region105: #{tpu_custom_call.1} parent=103 // pred_check
          %p949 = pneg %p194
        $region106: #{tpu_custom_call.1} parent=103 // pred_check_branch
          %951 = sbr.rel (%p949) target = $region108
        $region107: #{tpu_custom_call.1} parent=103 // pred_region
          %s952 = sand.u32 %s179, 1
          %s953 = sand.u32 %s179, 1
          %s954 = smul.addr %s953, 64
          %s955 = scalar_lea.vmem [#allocation2], %s954
        $region108: #{tpu_custom_call.1} parent=103 // pred_fallthru
          _
      $region104: #{tpu_custom_call.1} parent=5 // pred_fallthru
        _
    $region6: #{tpu_custom_call.1} parent=1 // loop_footer
      %s17 = sadd.s32 1, %s13
    $region7: #{tpu_custom_call.1} parent=1 // loop_footer_branch
      %12 = sbr.rel target = $region3
    $region8: #{tpu_custom_call.1} parent=1 // loop_exit
      _

</llo_original>
